<compile_context>
chip_gen: v7x
topology: tpu7x:2x2x1
jax: 0.10.0
libtpu: 0.0.40
codegen_flags: <defaults>
</compile_context>

<pallas_src>
import functools

import jax
import jax.numpy as jnp
from jax.experimental import pallas as pl
from jax.experimental.pallas import tpu as pltpu


def _round_up(x, m):
    return (x + m - 1) // m * m


def _tdnn_kernel(x_ref, w_ref, bias_ref, scale_ref, shift_ref, o_ref, *,
                 kernel_size, dilation, tile_l, slab_len):
    # x_ref:     (1, L_pad, C_in_pad)   one batch element, channels-last (resident per batch)
    # w_ref:     (K*C_in_pad, tile_co)  fused conv weight tile, rows ordered [tap k][c_in]
    # bias_ref:  (1, tile_co)           conv bias
    # scale_ref: (1, tile_co)           folded BatchNorm (eval) scale
    # shift_ref: (1, tile_co)           folded BatchNorm (eval) shift
    # o_ref:     (1, tile_l, tile_co)
    l0 = pl.multiple_of(pl.program_id(2) * tile_l, tile_l)
    slab = x_ref[0, pl.ds(l0, slab_len), :]                 # (slab_len, C_in_pad)
    taps = [slab[k * dilation:k * dilation + tile_l, :] for k in range(kernel_size)]
    lhs = taps[0] if kernel_size == 1 else jnp.concatenate(taps, axis=1)  # (tile_l, K*C_in_pad)
    acc = jnp.dot(lhs, w_ref[...], preferred_element_type=jnp.float32)    # single MXU call
    acc = acc + bias_ref[...]                               # conv bias (before ReLU)
    acc = jnp.maximum(acc, 0.0)                             # ReLU
    acc = acc * scale_ref[...] + shift_ref[...]             # BatchNorm1d (eval, folded)
    # Dropout(p=0.5) in eval mode is identity.
    o_ref[0] = acc.astype(o_ref.dtype)


def tdnn_block(x, weight, bias, gamma, beta, running_mean, running_var, *,
               dilation=1, eps=1e-5, compute_dtype=jnp.bfloat16,
               tile_l=256, tile_co=128):
    """Eval-mode TDNN block.  x: (N, C_in, L); weight: (C_out, C_in, K); rest: (C_out,)."""
    n, c_in, length = x.shape
    c_out, _, k = weight.shape
    halo = dilation * (k - 1)
    l_out = length - halo
    if l_out <= 0:
        raise ValueError("sequence too short for this kernel_size / dilation")
    assert tile_co % 128 == 0 and tile_l % 8 == 0

    # Shrink tiles for small problems while keeping (8,128) alignment.
    tile_l = min(tile_l, _round_up(l_out, 8))
    tile_co = min(tile_co, _round_up(c_out, 128))

    c_in_pad = _round_up(c_in, 128)           # lane-aligned im2col chunks
    c_out_pad = _round_up(c_out, tile_co)
    l_out_pad = _round_up(l_out, tile_l)
    halo_pad = _round_up(halo, 8) if halo else 0
    l_pad = l_out_pad + halo_pad
    slab_len = tile_l + halo_pad

    # Fold eval-mode BatchNorm into a single scale/shift pair (f32).
    scale = (gamma.astype(jnp.float32)
             / jnp.sqrt(running_var.astype(jnp.float32) + eps))
    shift = beta.astype(jnp.float32) - running_mean.astype(jnp.float32) * scale

    # x: (N, C_in, L) -> channels-last, zero-padded, MXU dtype.
    x_t = jnp.transpose(x, (0, 2, 1)).astype(jnp.float32)
    x_t = jnp.pad(x_t, ((0, 0), (0, l_pad - length), (0, c_in_pad - c_in)))
    x_t = x_t.astype(compute_dtype)

    # weight: (C_out, C_in, K) -> (K*C_in_pad, C_out_pad), rows ordered [tap k][c_in].
    w_t = jnp.transpose(weight, (2, 1, 0)).astype(jnp.float32)        # (K, C_in, C_out)
    w_t = jnp.pad(w_t, ((0, 0), (0, c_in_pad - c_in), (0, c_out_pad - c_out)))
    w_t = w_t.reshape(k * c_in_pad, c_out_pad).astype(compute_dtype)

    def _row(v):
        v = jnp.pad(v.astype(jnp.float32), (0, c_out_pad - c_out))
        return v.reshape(1, c_out_pad)

    bias_r, scale_r, shift_r = _row(bias), _row(scale), _row(shift)

    n_co = c_out_pad // tile_co
    n_lt = l_out_pad // tile_l

    kern = functools.partial(_tdnn_kernel, kernel_size=k, dilation=dilation,
                             tile_l=tile_l, slab_len=slab_len)

    out = pl.pallas_call(
        kern,
        out_shape=jax.ShapeDtypeStruct((n, l_out_pad, c_out_pad), jnp.float32),
        grid_spec=pltpu.PrefetchScalarGridSpec(
            num_scalar_prefetch=0,
            grid=(n, n_co, n_lt),                          # no reduction axis -> all parallel
            in_specs=[
                pl.BlockSpec((1, l_pad, c_in_pad), lambda b, co, lt: (b, 0, 0)),       # x (per-batch)
                pl.BlockSpec((k * c_in_pad, tile_co), lambda b, co, lt: (0, co)),      # fused weight
                pl.BlockSpec((1, tile_co), lambda b, co, lt: (0, co)),                 # conv bias
                pl.BlockSpec((1, tile_co), lambda b, co, lt: (0, co)),                 # bn scale
                pl.BlockSpec((1, tile_co), lambda b, co, lt: (0, co)),                 # bn shift
            ],
            out_specs=pl.BlockSpec((1, tile_l, tile_co), lambda b, co, lt: (b, lt, co)),
        ),
        compiler_params=pltpu.CompilerParams(
            dimension_semantics=("parallel", "parallel", "parallel"),
            vmem_limit_bytes=32 * 1024 * 1024),
    )(x_t, w_t, bias_r, scale_r, shift_r)

    out = out[:, :l_out, :c_out]                           # drop L / C_out padding
    return jnp.transpose(out, (0, 2, 1)).astype(x.dtype)   # back to PyTorch NCL layout


def _reference(x, weight, bias, gamma, beta, rm, rv, *, dilation, eps):
    y = jax.lax.conv_general_dilated(
        x, weight, window_strides=(1,), padding="VALID",
        rhs_dilation=(dilation,), dimension_numbers=("NCH", "OIH", "NCH"))
    y = y + bias[None, :, None]
    y = jnp.maximum(y, 0.0)
    scale = gamma / jnp.sqrt(rv + eps)
    shift = beta - rm * scale
    return y * scale[None, :, None] + shift[None, :, None]


if __name__ == "__main__":
    key = jax.random.PRNGKey(0)
    ks = jax.random.split(key, 7)
    EPS = 1e-5

    # Small shapes consistent with the module (in_channels=24, kernel_size=5),
    # single kernel compile to keep the script fast. Default bf16 MXU operands.
    N, C_IN, C_OUT, K, DIL, L = 2, 24, 64, 5, 1, 64
    x = jax.random.normal(ks[0], (N, C_IN, L), jnp.float32)
    weight = 0.1 * jax.random.normal(ks[1], (C_OUT, C_IN, K), jnp.float32)
    bias = 0.1 * jax.random.normal(ks[2], (C_OUT,), jnp.float32)
    gamma = 1.0 + 0.1 * jax.random.normal(ks[3], (C_OUT,), jnp.float32)
    beta = 0.1 * jax.random.normal(ks[4], (C_OUT,), jnp.float32)
    rm = 0.1 * jax.random.normal(ks[5], (C_OUT,), jnp.float32)
    rv = jnp.abs(1.0 + 0.1 * jax.random.normal(ks[6], (C_OUT,), jnp.float32))

    out = tdnn_block(x, weight, bias, gamma, beta, rm, rv, dilation=DIL, eps=EPS)
    out = jax.block_until_ready(out)

    ref = _reference(x, weight, bias, gamma, beta, rm, rv, dilation=DIL, eps=EPS)
    assert out.shape == (N, C_OUT, L - DIL * (K - 1)), out.shape
    assert jnp.allclose(out, ref, atol=5e-2, rtol=5e-2), "kernel mismatch vs reference"

    print("KERNEL_OK")
</pallas_src>

<mosaic_0001>
module attributes {stable_mosaic.version = 11 : i64} {
  func.func @_tdnn_kernel(%arg0: i32, %arg1: i32, %arg2: i32, %arg3: memref<1x72x128xbf16, #tpu.memory_space<vmem>>, %arg4: memref<640x128xbf16, #tpu.memory_space<vmem>>, %arg5: memref<1x128xf32, #tpu.memory_space<vmem>>, %arg6: memref<1x128xf32, #tpu.memory_space<vmem>>, %arg7: memref<1x128xf32, #tpu.memory_space<vmem>>, %arg8: memref<1x64x128xf32, #tpu.memory_space<vmem>>) attributes {dimension_semantics = [#tpu.dimension_semantics<parallel>, #tpu.dimension_semantics<parallel>, #tpu.dimension_semantics<parallel>], iteration_bounds = array<i64: 2, 1, 1>, scalar_prefetch = 0 : i64, scratch_operands = 0 : i64, tpu.core_type = #tpu.core_type<tc>, window_params = [{transform_indices = @transform_0, window_bounds = array<i64: 1, 72, 128>}, {transform_indices = @transform_1, window_bounds = array<i64: 640, 128>}, {transform_indices = @transform_2, window_bounds = array<i64: 1, 128>}, {transform_indices = @transform_3, window_bounds = array<i64: 1, 128>}, {transform_indices = @transform_4, window_bounds = array<i64: 1, 128>}, {transform_indices = @transform_5, window_bounds = array<i64: 1, 64, 128>}]} {
    %c64_i32 = arith.constant 64 : i32
    %0 = arith.muli %arg2, %c64_i32 : i32
    %1 = tpu.assume_multiple %0, 64 : i32
    %c0 = arith.constant 0 : index
    %2 = arith.index_cast %1 : i32 to index
    %c0_0 = arith.constant 0 : index
    %3 = vector.load %arg3[%c0, %2, %c0_0] : memref<1x72x128xbf16, #tpu.memory_space<vmem>>, vector<1x72x128xbf16>
    %4 = vector.shape_cast %3 : vector<1x72x128xbf16> to vector<72x128xbf16>
    %5 = vector.extract_strided_slice %4 {offsets = [0, 0], sizes = [64, 128], strides = [1, 1]} : vector<72x128xbf16> to vector<64x128xbf16>
    %6 = vector.extract_strided_slice %4 {offsets = [1, 0], sizes = [64, 128], strides = [1, 1]} : vector<72x128xbf16> to vector<64x128xbf16>
    %7 = vector.extract_strided_slice %4 {offsets = [2, 0], sizes = [64, 128], strides = [1, 1]} : vector<72x128xbf16> to vector<64x128xbf16>
    %8 = vector.extract_strided_slice %4 {offsets = [3, 0], sizes = [64, 128], strides = [1, 1]} : vector<72x128xbf16> to vector<64x128xbf16>
    %9 = vector.extract_strided_slice %4 {offsets = [4, 0], sizes = [64, 128], strides = [1, 1]} : vector<72x128xbf16> to vector<64x128xbf16>
    %10 = tpu.concatenate %5, %6, %7, %8, %9 in 1 : vector<64x128xbf16>, vector<64x128xbf16>, vector<64x128xbf16>, vector<64x128xbf16>, vector<64x128xbf16> -> vector<64x640xbf16>
    %c0_1 = arith.constant 0 : index
    %c0_2 = arith.constant 0 : index
    %11 = vector.load %arg4[%c0_1, %c0_2] : memref<640x128xbf16, #tpu.memory_space<vmem>>, vector<640x128xbf16>
    %cst = arith.constant dense<0.000000e+00> : vector<64x128xf32>
    %12 = tpu.matmul %10, %11, %cst {dimension_numbers = #tpu.dot_dimension_numbers<[1], [0], [0], [1], [0, 0, 1, 1], [], []>} : vector<64x640xbf16>, vector<640x128xbf16>, vector<64x128xf32> -> vector<64x128xf32>
    %c0_3 = arith.constant 0 : index
    %c0_4 = arith.constant 0 : index
    %13 = vector.load %arg5[%c0_3, %c0_4] : memref<1x128xf32, #tpu.memory_space<vmem>>, vector<1x128xf32>
    %14 = vector.broadcast %13 : vector<1x128xf32> to vector<64x128xf32>
    %15 = arith.addf %12, %14 : vector<64x128xf32>
    %cst_5 = arith.constant 0.000000e+00 : f32
    %16 = vector.broadcast %cst_5 : f32 to vector<64x128xf32>
    %17 = arith.maximumf %15, %16 : vector<64x128xf32>
    %c0_6 = arith.constant 0 : index
    %c0_7 = arith.constant 0 : index
    %18 = vector.load %arg6[%c0_6, %c0_7] : memref<1x128xf32, #tpu.memory_space<vmem>>, vector<1x128xf32>
    %19 = vector.broadcast %18 : vector<1x128xf32> to vector<64x128xf32>
    %20 = arith.mulf %17, %19 : vector<64x128xf32>
    %c0_8 = arith.constant 0 : index
    %c0_9 = arith.constant 0 : index
    %21 = vector.load %arg7[%c0_8, %c0_9] : memref<1x128xf32, #tpu.memory_space<vmem>>, vector<1x128xf32>
    %22 = vector.broadcast %21 : vector<1x128xf32> to vector<64x128xf32>
    %23 = arith.addf %20, %22 : vector<64x128xf32>
    %c0_10 = arith.constant 0 : index
    %c0_11 = arith.constant 0 : index
    %c0_12 = arith.constant 0 : index
    %24 = vector.load %arg8[%c0_10, %c0_11, %c0_12] : memref<1x64x128xf32, #tpu.memory_space<vmem>>, vector<1x64x128xf32>
    %25 = vector.shape_cast %24 : vector<1x64x128xf32> to vector<64x128xf32>
    %26 = vector.shape_cast %23 : vector<64x128xf32> to vector<1x64x128xf32>
    tpu.vector_store %arg8[%c0_10, %c0_11, %c0_12], %26 {strides = array<i32>} : memref<1x64x128xf32, #tpu.memory_space<vmem>>, vector<1x64x128xf32>,
    return
  }
  func.func @transform_0(%arg0: i32, %arg1: i32, %arg2: i32) -> (i32, i32, i32) {
    %c0_i32 = arith.constant 0 : i32
    %c0_i32_0 = arith.constant 0 : i32
    %c0_i32_1 = arith.constant 0 : i32
    return %arg0, %c0_i32, %c0_i32_0 : i32, i32, i32
  }
  func.func @transform_1(%arg0: i32, %arg1: i32, %arg2: i32) -> (i32, i32) {
    %c0_i32 = arith.constant 0 : i32
    %c0_i32_0 = arith.constant 0 : i32
    return %c0_i32, %arg1 : i32, i32
  }
  func.func @transform_2(%arg0: i32, %arg1: i32, %arg2: i32) -> (i32, i32) {
    %c0_i32 = arith.constant 0 : i32
    %c0_i32_0 = arith.constant 0 : i32
    return %c0_i32, %arg1 : i32, i32
  }
  func.func @transform_3(%arg0: i32, %arg1: i32, %arg2: i32) -> (i32, i32) {
    %c0_i32 = arith.constant 0 : i32
    %c0_i32_0 = arith.constant 0 : i32
    return %c0_i32, %arg1 : i32, i32
  }
  func.func @transform_4(%arg0: i32, %arg1: i32, %arg2: i32) -> (i32, i32) {
    %c0_i32 = arith.constant 0 : i32
    %c0_i32_0 = arith.constant 0 : i32
    return %c0_i32, %arg1 : i32, i32
  }
  func.func @transform_5(%arg0: i32, %arg1: i32, %arg2: i32) -> (i32, i32, i32) {
    %c0_i32 = arith.constant 0 : i32
    return %arg0, %arg2, %arg1 : i32, i32, i32
  }
}

</mosaic_0001>

<llo_original>
// kernel: tpu_custom_call.1
$region0: #{tpu_custom_call.1}
  #allocation0 [shape = 'u32[]', space=smem, size = 0x4, offset = 0x4, fixed_abs, tag = 'smem constant byte address 0x4 - core index']
  #allocation1 [shape = 'u32[144,128]{1,0:T(1,128)}', space=vmem, size = 0x12000, scoped, tag = 'internal scratch']
  %s0 = inlined_call_operand.hbm [shape: bf16[2,72,128], index: 0, kind: input, shape index: {}]
  %s1 = inlined_call_operand.hbm [shape: bf16[640,128], index: 1, kind: input, shape index: {}]
  %s2 = inlined_call_operand.vmem [shape: f32[1,128], index: 2, kind: input, shape index: {}]
  %s3 = inlined_call_operand.vmem [shape: f32[1,128], index: 3, kind: input, shape index: {}]
  %s4 = inlined_call_operand.vmem [shape: f32[1,128], index: 4, kind: input, shape index: {}]
  %s5 = inlined_call_operand.hbm [shape: f32[2,64,128], index: 5, kind: output, shape index: {}]
  %s6 = sld [smem:[#allocation0]]
  $region61: #{tpu_custom_call.1} parent=0
    _
  %s8 = ssub.s32 1, %s6
  %s9 = scalar_select 0, %s8, %s6
  $region1: #{tpu_custom_call.1} parent=0
    #allocation2 [shape = 'u8[36864]{0}', space=vmem, size = 0x9000, scoped, tag = 'input window, operand 0']
    #allocation3 [shape = 's32[2]{0}', space=sflag, size = 0x8, scoped, tag = 'scoped memory for tpu_custom_call.1']
    #allocation4 [shape = 's32[2]{0}', space=sflag, size = 0x8, scoped, tag = 'scoped memory for tpu_custom_call.1']
    #allocation5 [shape = 'u8[163840]{0}', space=vmem, size = 0x28000, scoped, tag = 'input window, operand 1, single buffered']
    #allocation6 [shape = 's32[1]{0}', space=sflag, size = 0x4, scoped, tag = 'scoped memory for tpu_custom_call.1']
    #allocation7 [shape = 'u8[65536]{0}', space=vmem, size = 0x10000, scoped, tag = 'output window, operand 0']
    %10 = vsyncpa [#allocation3], 0
    %s11 = scalar_lea.sflag [#allocation3], 1
    %12 = vsyncpa %s11, 0
    %13 = vsyncpa [#allocation6], 0
    %14 = vsyncpa [#allocation4], 0
    %s15 = scalar_lea.sflag [#allocation4], 1
    %16 = vsyncpa %s15, 0
    loop: start=0, step=1, limit=4
    $region2: #{tpu_custom_call.1} parent=1 // loop_pre_header
      _
    $region3: #{tpu_custom_call.1} parent=1 // loop_header
      %s18 = sphi 0, %s22
      %p19 = scmp.ge.s32.totalorder %s18, 4
      %s25 = sphi 0, %s44
      %s26 = sphi 0, %s40
      %s27 = sphi 0, %s36
      %s28 = sphi 0, %s25
      %s29 = sphi 0, %s26
      %s30 = sphi 0, %s27
      %s31 = sphi 0, %s28
      %s32 = sphi 0, %s29
      %s33 = sphi 0, %s30
      %s47 = sphi 0, %s49
      %s50 = sphi 0, %s47
      %s51 = sphi 0, %s50
      %s67 = sphi 0, %s51
      %s73 = sphi 0, %s75
      %s76 = sphi 0, %s73
      %s77 = sphi 0, %s76
      %s93 = sphi 0, %s77
      %s99 = sphi 0, %s101
      %s102 = sphi 0, %s99
      %s103 = sphi 0, %s102
      %s119 = sphi 0, %s103
      %s125 = sphi 0, %s127
      %s128 = sphi 0, %s125
      %s129 = sphi 0, %s128
      %s145 = sphi 0, %s129
      %s151 = sphi 0, %s153
      %s154 = sphi 0, %s151
      %s155 = sphi 0, %s154
      %s171 = sphi 0, %s155
      %s181 = sphi 0, %s183
      %s184 = sphi 0, %s181
      %s185 = sphi 0, %s184
      %s201 = sphi 0, %s185
    $region4: #{tpu_custom_call.1} parent=1 // loop_header_branch
      %21 = sbr.rel (%p19) target = $region8
    $region5: #{tpu_custom_call.1} parent=1 // loop_body
      %s23 = ssub.s32 %s18, 1
      %s24 = ssub.s32 %s18, 2
      %s34 = sadd.s32 1, %s27
      %p35 = scmp.ge.s32.totalorder %s34, 1
      %s36 = scalar_select %p35, 0, %s34
      %s37 = sadd.s32 1, %s26
      %s38 = scalar_select %p35, %s37, %s26
      %p39 = scmp.ge.s32.totalorder %s38, 1
      %s40 = scalar_select %p39, 0, %s38
      %s41 = sadd.s32 1, %s25
      %s42 = scalar_select %p39, %s41, %s25
      %p43 = scmp.ge.s32.totalorder %s42, 2
      %s44 = scalar_select %p43, 0, %s42
      %s45 = ssub.s32 %s25, %s44
      %p46 = scmp.eq.s32.totalorder %s45, 0
      %s48 = sadd.s32 %s47, 1
      %s49 = scalar_select %p46, %s47, %s48
      %p52 = pneg %p46
      %p53 = scmp.eq.s32.totalorder %s18, 1
      %p54 = por %p52, %p53
      %p55 = scmp.ne.s32.totalorder %s47, %s50
      %p56 = scmp.eq.s32.totalorder %s18, 0
      %p57 = por %p55, %p56
      %p58 = scmp.ne.s32.totalorder %s47, %s50
      %p59 = scmp.eq.s32.totalorder %s23, 1
      %p60 = por %p58, %p59
      %p61 = scmp.ne.s32.totalorder %s50, %s51
      %p62 = scmp.eq.s32.totalorder %s23, 0
      %p63 = por %p61, %p62
      %p64 = scmp.ne.s32.totalorder %s50, %s51
      %p65 = scmp.eq.s32.totalorder %s24, 1
      %p66 = por %p64, %p65
      %p68 = scmp.ne.s32.totalorder %s51, %s67
      %p69 = scmp.eq.s32.totalorder %s24, 0
      %p70 = por %p68, %p69
      %s71 = ssub.s32 %s26, %s40
      %p72 = scmp.eq.s32.totalorder %s71, 0
      %s74 = sadd.s32 %s73, 1
      %s75 = scalar_select %p72, %s73, %s74
      %p78 = pneg %p72
      %p79 = scmp.eq.s32.totalorder %s18, 1
      %p80 = por %p78, %p79
      %p81 = scmp.ne.s32.totalorder %s73, %s76
      %p82 = scmp.eq.s32.totalorder %s18, 0
      %p83 = por %p81, %p82
      %p84 = scmp.ne.s32.totalorder %s73, %s76
      %p85 = scmp.eq.s32.totalorder %s23, 1
      %p86 = por %p84, %p85
      %p87 = scmp.ne.s32.totalorder %s76, %s77
      %p88 = scmp.eq.s32.totalorder %s23, 0
      %p89 = por %p87, %p88
      %p90 = scmp.ne.s32.totalorder %s76, %s77
      %p91 = scmp.eq.s32.totalorder %s24, 1
      %p92 = por %p90, %p91
      %p94 = scmp.ne.s32.totalorder %s77, %s93
      %p95 = scmp.eq.s32.totalorder %s24, 0
      %p96 = por %p94, %p95
      %s97 = ssub.s32 %s26, %s40
      %p98 = scmp.eq.s32.totalorder %s97, 0
      %s100 = sadd.s32 %s99, 1
      %s101 = scalar_select %p98, %s99, %s100
      %p104 = pneg %p98
      %p105 = scmp.eq.s32.totalorder %s18, 1
      %p106 = por %p104, %p105
      %p107 = scmp.ne.s32.totalorder %s99, %s102
      %p108 = scmp.eq.s32.totalorder %s18, 0
      %p109 = por %p107, %p108
      %p110 = scmp.ne.s32.totalorder %s99, %s102
      %p111 = scmp.eq.s32.totalorder %s23, 1
      %p112 = por %p110, %p111
      %p113 = scmp.ne.s32.totalorder %s102, %s103
      %p114 = scmp.eq.s32.totalorder %s23, 0
      %p115 = por %p113, %p114
      %p116 = scmp.ne.s32.totalorder %s102, %s103
      %p117 = scmp.eq.s32.totalorder %s24, 1
      %p118 = por %p116, %p117
      %p120 = scmp.ne.s32.totalorder %s103, %s119
      %p121 = scmp.eq.s32.totalorder %s24, 0
      %p122 = por %p120, %p121
      %s123 = ssub.s32 %s26, %s40
      %p124 = scmp.eq.s32.totalorder %s123, 0
      %s126 = sadd.s32 %s125, 1
      %s127 = scalar_select %p124, %s125, %s126
      %p130 = pneg %p124
      %p131 = scmp.eq.s32.totalorder %s18, 1
      %p132 = por %p130, %p131
      %p133 = scmp.ne.s32.totalorder %s125, %s128
      %p134 = scmp.eq.s32.totalorder %s18, 0
      %p135 = por %p133, %p134
      %p136 = scmp.ne.s32.totalorder %s125, %s128
      %p137 = scmp.eq.s32.totalorder %s23, 1
      %p138 = por %p136, %p137
      %p139 = scmp.ne.s32.totalorder %s128, %s129
      %p140 = scmp.eq.s32.totalorder %s23, 0
      %p141 = por %p139, %p140
      %p142 = scmp.ne.s32.totalorder %s128, %s129
      %p143 = scmp.eq.s32.totalorder %s24, 1
      %p144 = por %p142, %p143
      %p146 = scmp.ne.s32.totalorder %s129, %s145
      %p147 = scmp.eq.s32.totalorder %s24, 0
      %p148 = por %p146, %p147
      %s149 = ssub.s32 %s26, %s40
      %p150 = scmp.eq.s32.totalorder %s149, 0
      %s152 = sadd.s32 %s151, 1
      %s153 = scalar_select %p150, %s151, %s152
      %p156 = pneg %p150
      %p157 = scmp.eq.s32.totalorder %s18, 1
      %p158 = por %p156, %p157
      %p159 = scmp.ne.s32.totalorder %s151, %s154
      %p160 = scmp.eq.s32.totalorder %s18, 0
      %p161 = por %p159, %p160
      %p162 = scmp.ne.s32.totalorder %s151, %s154
      %p163 = scmp.eq.s32.totalorder %s23, 1
      %p164 = por %p162, %p163
      %p165 = scmp.ne.s32.totalorder %s154, %s155
      %p166 = scmp.eq.s32.totalorder %s23, 0
      %p167 = por %p165, %p166
      %p168 = scmp.ne.s32.totalorder %s154, %s155
      %p169 = scmp.eq.s32.totalorder %s24, 1
      %p170 = por %p168, %p169
      %p172 = scmp.ne.s32.totalorder %s155, %s171
      %p173 = scmp.eq.s32.totalorder %s24, 0
      %p174 = por %p172, %p173
      %s175 = ssub.s32 %s25, %s44
      %s176 = ssub.s32 %s27, %s36
      %s177 = sor.u32 %s175, %s176
      %s178 = ssub.s32 %s26, %s40
      %s179 = sor.u32 %s177, %s178
      %p180 = scmp.eq.s32.totalorder %s179, 0
      %s182 = sadd.s32 %s181, 1
      %s183 = scalar_select %p180, %s181, %s182
      %p186 = pneg %p180
      %p187 = scmp.eq.s32.totalorder %s18, 1
      %p188 = por %p186, %p187
      %p189 = scmp.ne.s32.totalorder %s181, %s184
      %p190 = scmp.eq.s32.totalorder %s18, 0
      %p191 = por %p189, %p190
      %p192 = scmp.ne.s32.totalorder %s181, %s184
      %p193 = scmp.eq.s32.totalorder %s23, 1
      %p194 = por %p192, %p193
      %p195 = scmp.ne.s32.totalorder %s184, %s185
      %p196 = scmp.eq.s32.totalorder %s23, 0
      %p197 = por %p195, %p196
      %p198 = scmp.ne.s32.totalorder %s184, %s185
      %p199 = scmp.eq.s32.totalorder %s24, 1
      %p200 = por %p198, %p199
      %p202 = scmp.ne.s32.totalorder %s185, %s201
      %p203 = scmp.eq.s32.totalorder %s24, 0
      %p204 = por %p202, %p203
      %p205 = scmp.le.s32.totalorder 1, %s18
      %p206 = scmp.lt.s32.totalorder %s18, 3
      %p207 = pnand %p205, %p206
      %p208 = pneg %p207
      // Predicated region
      $region9: #{tpu_custom_call.1} parent=5 // pred_check
        _
      $region10: #{tpu_custom_call.1} parent=5 // pred_check_branch
        %210 = sbr.rel (%p207) target = $region12
      $region11: #{tpu_custom_call.1} parent=5 // pred_region
        %s211 = ssub.s32 %s18, 1
        // Predicated region
        $region13: #{tpu_custom_call.1} parent=11 // pred_check
          %p212 = pneg %p89
        $region14: #{tpu_custom_call.1} parent=11 // pred_check_branch
          %214 = sbr.rel (%p212) target = $region16
        $region15: #{tpu_custom_call.1} parent=11 // pred_region
          %s216 = ssub.s32 5120, 5120
          %217 = vsyncadd [#allocation6], %s216
          %s218 = smul.addr %s29, 64
          %s219 = scalar_lea.hbm %s1, %s218
          %s220 = sshll.u32 [#allocation5], 4
          %s221 = int_to_ptr.vmem [resolvable:$true] %s220
          %226 = dma.hbm_to_vmem [thread:$0]  %s219, 5120, %s221, [#allocation6], 64, 64, 4
        $region16: #{tpu_custom_call.1} parent=11 // pred_fallthru
          _
        // Predicated region
        $region17: #{tpu_custom_call.1} parent=11 // pred_check
          %p227 = pneg %p115
        $region18: #{tpu_custom_call.1} parent=11 // pred_check_branch
          %229 = sbr.rel (%p227) target = $region20
        $region19: #{tpu_custom_call.1} parent=11 // pred_region
          %p230 = scmp.lt.s32.totalorder %s29, 0
          %s231 = scalar_select %p230, %s29, 0
          %s232 = scalar_lea.vmem %s2, %s231
        $region20: #{tpu_custom_call.1} parent=11 // pred_fallthru
          _
        // Predicated region
        $region21: #{tpu_custom_call.1} parent=11 // pred_check
          %p233 = pneg %p141
        $region22: #{tpu_custom_call.1} parent=11 // pred_check_branch
          %235 = sbr.rel (%p233) target = $region24
        $region23: #{tpu_custom_call.1} parent=11 // pred_region
          %p236 = scmp.lt.s32.totalorder %s29, 0
          %s237 = scalar_select %p236, %s29, 0
          %s238 = scalar_lea.vmem %s3, %s237
        $region24: #{tpu_custom_call.1} parent=11 // pred_fallthru
          _
        // Predicated region
        $region25: #{tpu_custom_call.1} parent=11 // pred_check
          %p239 = pneg %p167
        $region26: #{tpu_custom_call.1} parent=11 // pred_check_branch
          %241 = sbr.rel (%p239) target = $region28
        $region27: #{tpu_custom_call.1} parent=11 // pred_region
          %p242 = scmp.lt.s32.totalorder %s29, 0
          %s243 = scalar_select %p242, %s29, 0
          %s244 = scalar_lea.vmem %s4, %s243
        $region28: #{tpu_custom_call.1} parent=11 // pred_fallthru
          _
      $region12: #{tpu_custom_call.1} parent=5 // pred_fallthru
        _
      %p245 = scmp.lt.s32.totalorder %s18, 2
      // Predicated region
      $region29: #{tpu_custom_call.1} parent=5 // pred_check
        %p246 = pneg %p245
      $region30: #{tpu_custom_call.1} parent=5 // pred_check_branch
        %248 = sbr.rel (%p246) target = $region32
      $region31: #{tpu_custom_call.1} parent=5 // pred_region
        // Predicated region
        $region33: #{tpu_custom_call.1} parent=31 // pred_check
          %p249 = pneg %p57
        $region34: #{tpu_custom_call.1} parent=31 // pred_check_branch
          %251 = sbr.rel (%p249) target = $region36
        $region35: #{tpu_custom_call.1} parent=31 // pred_region
          %s252 = sand.u32 %s47, 1
          %s253 = scalar_lea.sflag [#allocation3], %s252
          %s254 = sand.u32 %s47, 1
          %s255 = smul.addr %s254, 36
          %s256 = scalar_lea.vmem [#allocation2], %s255
          %s258 = ssub.s32 576, 576
          %259 = vsyncadd %s253, %s258
          %s260 = smul.addr %s25, 9
          %s261 = smul.addr %s260, 64
          %s262 = scalar_lea.hbm %s0, %s261
          %s263 = sshll.u32 %s256, 4
          %s264 = int_to_ptr.vmem [resolvable:$true] %s263
          %269 = dma.hbm_to_vmem [thread:$0]  %s262, 576, %s264, %s253, 64, 64, 4
        $region36: #{tpu_custom_call.1} parent=31 // pred_fallthru
          _
      $region32: #{tpu_custom_call.1} parent=5 // pred_fallthru
        _
      %p270 = scmp.le.s32.totalorder 1, %s18
      %p271 = scmp.lt.s32.totalorder %s18, 3
      %p272 = pnand %p270, %p271
      %p273 = pneg %p272
      // Predicated region
      $region37: #{tpu_custom_call.1} parent=5 // pred_check
        _
      $region38: #{tpu_custom_call.1} parent=5 // pred_check_branch
        %275 = sbr.rel (%p272) target = $region40
      $region39: #{tpu_custom_call.1} parent=5 // pred_region
        %s276 = ssub.s32 %s18, 1
        %s277 = sand.u32 %s50, 1
        %s278 = scalar_lea.sflag [#allocation3], %s277
        %s279 = sand.u32 %s50, 1
        %s280 = smul.addr %s279, 36
        %s281 = scalar_lea.vmem [#allocation2], %s280
        // Predicated region
        $region41: #{tpu_custom_call.1} parent=39 // pred_check
          %p282 = pneg %p63
        $region42: #{tpu_custom_call.1} parent=39 // pred_check_branch
          %284 = sbr.rel (%p282) target = $region44
        $region43: #{tpu_custom_call.1} parent=39 // pred_region
          %285 = dma.done %s278, 576
        $region44: #{tpu_custom_call.1} parent=39 // pred_fallthru
          _
        // Predicated region
        $region45: #{tpu_custom_call.1} parent=39 // pred_check
          %p286 = pneg %p89
        $region46: #{tpu_custom_call.1} parent=39 // pred_check_branch
          %288 = sbr.rel (%p286) target = $region48
        $region47: #{tpu_custom_call.1} parent=39 // pred_region
          %289 = dma.done [#allocation6], 5120
        $region48: #{tpu_custom_call.1} parent=39 // pred_fallthru
          _
        %s290 = sand.u32 %s50, 1
        %s291 = scalar_lea.sflag [#allocation3], %s290
        %s292 = sand.u32 %s50, 1
        %s293 = smul.addr %s292, 36
        %s294 = scalar_lea.vmem [#allocation2], %s293
        %p295 = pneg %p63
        %p296 = pneg %p60
        %p297 = pneg %p89
        %p298 = pneg %p86
        %p299 = scmp.lt.s32.totalorder %s29, 0
        %s300 = scalar_select %p299, %s29, 0
        %s301 = scalar_lea.vmem %s2, %s300
        %p302 = pneg %p115
        %p303 = pneg %p112
        %p304 = scmp.lt.s32.totalorder %s29, 0
        %s305 = scalar_select %p304, %s29, 0
        %s306 = scalar_lea.vmem %s3, %s305
        %p307 = pneg %p141
        %p308 = pneg %p138
        %p309 = scmp.lt.s32.totalorder %s29, 0
        %s310 = scalar_select %p309, %s29, 0
        %s311 = scalar_lea.vmem %s4, %s310
        %p312 = pneg %p167
        %p313 = pneg %p164
        %p314 = pneg %p197
        %p315 = pneg %p194
        %s316 = sand.u32 %s184, 1
        %s317 = scalar_lea.sflag [#allocation4], %s316
        %s318 = sand.u32 %s184, 1
        %s319 = smul.addr %s318, 64
        %s320 = scalar_lea.vmem [#allocation7], %s319
        %p321 = scmp.lt.s32.totalorder %s29, 0
        %s322 = scalar_select %p321, %s29, 0
        %s323 = scalar_lea.vmem %s2, %s322
        %p324 = scmp.lt.s32.totalorder %s29, 0
        %s325 = scalar_select %p324, %s29, 0
        %s326 = scalar_lea.vmem %s3, %s325
        %p327 = scmp.lt.s32.totalorder %s29, 0
        %s328 = scalar_select %p327, %s29, 0
        %s329 = scalar_lea.vmem %s4, %s328
        %s330 = smul.u32 8, %s30
        %s332 = smul.u32 %s30, 64
        %s333 = sshra.s32 %s332, 3
        %s334 = sand.u32 %s332, 7
        %s335 = smul.addr %s333, 4
        %s336 = scalar_lea.vmem %s281, %s335 [#allocation2]
        %v337 = vld [vmem:[%s336] sm:$0xf]
        %v338 = vld [vmem:[%s336 + $0x4] sm:$0xf]
        %v339 = vld [vmem:[%s336 + $0x8] sm:$0xf]
        %v340 = vld [vmem:[%s336 + $0xc] sm:$0xf]
        %v341 = vld [vmem:[%s336 + $0x10] sm:$0xf]
        %v342 = vld [vmem:[%s336 + $0x14] sm:$0xf]
        %v343 = vld [vmem:[%s336 + $0x18] sm:$0xf]
        %v344 = vld [vmem:[%s336 + $0x1c] sm:$0xf]
        %v345 = vld [vmem:[%s336 + $0x20] sm:$0xf]
        %v354 = vunpack.c.l.b16 %v337
        %v355 = vunpack.c.l.b16 %v338
        %v356 = vunpack.c.l.b16 %v339
        %v357 = vunpack.c.l.b16 %v340
        %v358 = vunpack.c.l.b16 %v341
        %v359 = vunpack.c.l.b16 %v342
        %v360 = vunpack.c.l.b16 %v343
        %v361 = vunpack.c.l.b16 %v344
        %v362 = vpack.c.b16 %v355, %v354
        %v363 = vpack.c.b16 %v357, %v356
        %v364 = vpack.c.b16 %v359, %v358
        %v365 = vpack.c.b16 %v361, %v360
        %v371 = vunpack.c.l.b16 %v345
        %v372 = vpack.c.b16 %v371, %v371
        %vm373 = vsmask.f32 7424
        %v375 = vshrl.u32 %v362, 16
        %v377 = vshll.u32 %v362, 16
        %v379 = vrot.slane %v377, 1
        %v380 = vor.u32 %v375, %v379
        %v382 = vshll.u32 %v363, 16
        %v384 = vrot.slane %v382, 1
        %v385 = vsel %vm373, %v380, %v384
        %v386 = vshrl.u32 %v363, 16
        %v388 = vor.u32 %v386, %v384
        %v390 = vshll.u32 %v364, 16
        %v392 = vrot.slane %v390, 1
        %v393 = vsel %vm373, %v388, %v392
        %v394 = vshrl.u32 %v364, 16
        %v396 = vor.u32 %v394, %v392
        %v398 = vshll.u32 %v365, 16
        %v400 = vrot.slane %v398, 1
        %v401 = vsel %vm373, %v396, %v400
        %v402 = vshrl.u32 %v365, 16
        %v404 = vor.u32 %v402, %v400
        %v406 = vshll.u32 %v372, 16
        %v408 = vrot.slane %v406, 1
        %v409 = vsel %vm373, %v404, %v408
        %vm414 = vcmask 1046528
        %v415 = vrot.slane %v362, 1
        %v416 = vrot.slane %v363, 1
        %v417 = vsel %vm414, %v415, %v416
        %v418 = vrot.slane %v364, 1
        %v419 = vsel %vm414, %v416, %v418
        %v420 = vrot.slane %v365, 1
        %v421 = vsel %vm414, %v418, %v420
        %v422 = vrot.slane %v372, 1
        %v423 = vsel %vm414, %v420, %v422
        %vm428 = vsmask.f32 6400
        %v429 = vrot.slane %v375, 1
        %v430 = vrot.slane %v377, 2
        %v431 = vor.u32 %v429, %v430
        %v432 = vrot.slane %v386, 1
        %v433 = vrot.slane %v382, 2
        %v434 = vor.u32 %v432, %v433
        %v435 = vsel %vm428, %v431, %v434
        %v436 = vrot.slane %v394, 1
        %v437 = vrot.slane %v390, 2
        %v438 = vor.u32 %v436, %v437
        %v439 = vsel %vm428, %v434, %v438
        %v440 = vrot.slane %v402, 1
        %v441 = vrot.slane %v398, 2
        %v442 = vor.u32 %v440, %v441
        %v443 = vsel %vm428, %v438, %v442
        %v444 = vshrl.u32 %v372, 16
        %v446 = vrot.slane %v444, 1
        %v447 = vrot.slane %v406, 2
        %v448 = vor.u32 %v446, %v447
        %v449 = vsel %vm428, %v442, %v448
        %vm454 = vcmask 1045504
        %v455 = vrot.slane %v362, 2
        %v456 = vrot.slane %v363, 2
        %v457 = vsel %vm454, %v455, %v456
        %v458 = vrot.slane %v364, 2
        %v459 = vsel %vm454, %v456, %v458
        %v460 = vrot.slane %v365, 2
        %v461 = vsel %vm454, %v458, %v460
        %v462 = vrot.slane %v372, 2
        %v463 = vsel %vm454, %v460, %v462
        %v468 = vld [vmem:[#allocation5] sm:$0xf]
        %v469 = vld [vmem:[#allocation5 + $0x4] sm:$0xf]
        %v470 = vld [vmem:[#allocation5 + $0x8] sm:$0xf]
        %v471 = vld [vmem:[#allocation5 + $0xc] sm:$0xf]
        %v472 = vld [vmem:[#allocation5 + $0x10] sm:$0xf]
        %v473 = vld [vmem:[#allocation5 + $0x14] sm:$0xf]
        %v474 = vld [vmem:[#allocation5 + $0x18] sm:$0xf]
        %v475 = vld [vmem:[#allocation5 + $0x1c] sm:$0xf]
        %v476 = vld [vmem:[#allocation5 + $0x20] sm:$0xf]
        %v477 = vld [vmem:[#allocation5 + $0x24] sm:$0xf]
        %v478 = vld [vmem:[#allocation5 + $0x28] sm:$0xf]
        %v479 = vld [vmem:[#allocation5 + $0x2c] sm:$0xf]
        %v480 = vld [vmem:[#allocation5 + $0x30] sm:$0xf]
        %v481 = vld [vmem:[#allocation5 + $0x34] sm:$0xf]
        %v482 = vld [vmem:[#allocation5 + $0x38] sm:$0xf]
        %v483 = vld [vmem:[#allocation5 + $0x3c] sm:$0xf]
        %v484 = vld [vmem:[#allocation5 + $0x40] sm:$0xf]
        %v485 = vld [vmem:[#allocation5 + $0x44] sm:$0xf]
        %v486 = vld [vmem:[#allocation5 + $0x48] sm:$0xf]
        %v487 = vld [vmem:[#allocation5 + $0x4c] sm:$0xf]
        %v488 = vld [vmem:[#allocation5 + $0x50] sm:$0xf]
        %v489 = vld [vmem:[#allocation5 + $0x54] sm:$0xf]
        %v490 = vld [vmem:[#allocation5 + $0x58] sm:$0xf]
        %v491 = vld [vmem:[#allocation5 + $0x5c] sm:$0xf]
        %v492 = vld [vmem:[#allocation5 + $0x60] sm:$0xf]
        %v493 = vld [vmem:[#allocation5 + $0x64] sm:$0xf]
        %v494 = vld [vmem:[#allocation5 + $0x68] sm:$0xf]
        %v495 = vld [vmem:[#allocation5 + $0x6c] sm:$0xf]
        %v496 = vld [vmem:[#allocation5 + $0x70] sm:$0xf]
        %v497 = vld [vmem:[#allocation5 + $0x74] sm:$0xf]
        %v498 = vld [vmem:[#allocation5 + $0x78] sm:$0xf]
        %v499 = vld [vmem:[#allocation5 + $0x7c] sm:$0xf]
        %v500 = vld [vmem:[#allocation5 + $0x80] sm:$0xf]
        %v501 = vld [vmem:[#allocation5 + $0x84] sm:$0xf]
        %v502 = vld [vmem:[#allocation5 + $0x88] sm:$0xf]
        %v503 = vld [vmem:[#allocation5 + $0x8c] sm:$0xf]
        %v504 = vld [vmem:[#allocation5 + $0x90] sm:$0xf]
        %v505 = vld [vmem:[#allocation5 + $0x94] sm:$0xf]
        %v506 = vld [vmem:[#allocation5 + $0x98] sm:$0xf]
        %v507 = vld [vmem:[#allocation5 + $0x9c] sm:$0xf]
        %v508 = vld [vmem:[#allocation5 + $0xa0] sm:$0xf]
        %v509 = vld [vmem:[#allocation5 + $0xa4] sm:$0xf]
        %v510 = vld [vmem:[#allocation5 + $0xa8] sm:$0xf]
        %v511 = vld [vmem:[#allocation5 + $0xac] sm:$0xf]
        %v512 = vld [vmem:[#allocation5 + $0xb0] sm:$0xf]
        %v513 = vld [vmem:[#allocation5 + $0xb4] sm:$0xf]
        %v514 = vld [vmem:[#allocation5 + $0xb8] sm:$0xf]
        %v515 = vld [vmem:[#allocation5 + $0xbc] sm:$0xf]
        %v516 = vld [vmem:[#allocation5 + $0xc0] sm:$0xf]
        %v517 = vld [vmem:[#allocation5 + $0xc4] sm:$0xf]
        %v518 = vld [vmem:[#allocation5 + $0xc8] sm:$0xf]
        %v519 = vld [vmem:[#allocation5 + $0xcc] sm:$0xf]
        %v520 = vld [vmem:[#allocation5 + $0xd0] sm:$0xf]
        %v521 = vld [vmem:[#allocation5 + $0xd4] sm:$0xf]
        %v522 = vld [vmem:[#allocation5 + $0xd8] sm:$0xf]
        %v523 = vld [vmem:[#allocation5 + $0xdc] sm:$0xf]
        %v524 = vld [vmem:[#allocation5 + $0xe0] sm:$0xf]
        %v525 = vld [vmem:[#allocation5 + $0xe4] sm:$0xf]
        %v526 = vld [vmem:[#allocation5 + $0xe8] sm:$0xf]
        %v527 = vld [vmem:[#allocation5 + $0xec] sm:$0xf]
        %v528 = vld [vmem:[#allocation5 + $0xf0] sm:$0xf]
        %v529 = vld [vmem:[#allocation5 + $0xf4] sm:$0xf]
        %v530 = vld [vmem:[#allocation5 + $0xf8] sm:$0xf]
        %v531 = vld [vmem:[#allocation5 + $0xfc] sm:$0xf]
        %v532 = vld [vmem:[#allocation5 + $0x100] sm:$0xf]
        %v533 = vld [vmem:[#allocation5 + $0x104] sm:$0xf]
        %v534 = vld [vmem:[#allocation5 + $0x108] sm:$0xf]
        %v535 = vld [vmem:[#allocation5 + $0x10c] sm:$0xf]
        %v536 = vld [vmem:[#allocation5 + $0x110] sm:$0xf]
        %v537 = vld [vmem:[#allocation5 + $0x114] sm:$0xf]
        %v538 = vld [vmem:[#allocation5 + $0x118] sm:$0xf]
        %v539 = vld [vmem:[#allocation5 + $0x11c] sm:$0xf]
        %v540 = vld [vmem:[#allocation5 + $0x120] sm:$0xf]
        %v541 = vld [vmem:[#allocation5 + $0x124] sm:$0xf]
        %v542 = vld [vmem:[#allocation5 + $0x128] sm:$0xf]
        %v543 = vld [vmem:[#allocation5 + $0x12c] sm:$0xf]
        %v544 = vld [vmem:[#allocation5 + $0x130] sm:$0xf]
        %v545 = vld [vmem:[#allocation5 + $0x134] sm:$0xf]
        %v546 = vld [vmem:[#allocation5 + $0x138] sm:$0xf]
        %v547 = vld [vmem:[#allocation5 + $0x13c] sm:$0xf]
        %v548 = vld [vmem:[%s323] sm:$0x1]
        %v550 = vlaneseq
        %v551 = vshrl.u32 %v550, 7
        %v552 = vsub.s32 0, %v551
        %v553 = vrot.slane %v548, %v552
        %v635 = vunpack.c.l.b16 %v468
        %v636 = vunpack.c.l.b16 %v469
        %v637 = vunpack.c.l.b16 %v470
        %v638 = vunpack.c.l.b16 %v471
        %v639 = vunpack.c.l.b16 %v472
        %v640 = vunpack.c.l.b16 %v473
        %v641 = vunpack.c.l.b16 %v474
        %v642 = vunpack.c.l.b16 %v475
        %v643 = vunpack.c.l.b16 %v476
        %v644 = vunpack.c.l.b16 %v477
        %v645 = vunpack.c.l.b16 %v478
        %v646 = vunpack.c.l.b16 %v479
        %v647 = vunpack.c.l.b16 %v480
        %v648 = vunpack.c.l.b16 %v481
        %v649 = vunpack.c.l.b16 %v482
        %v650 = vunpack.c.l.b16 %v483
        %v651 = vunpack.c.l.b16 %v484
        %v652 = vunpack.c.l.b16 %v485
        %v653 = vunpack.c.l.b16 %v486
        %v654 = vunpack.c.l.b16 %v487
        %v655 = vunpack.c.l.b16 %v488
        %v656 = vunpack.c.l.b16 %v489
        %v657 = vunpack.c.l.b16 %v490
        %v658 = vunpack.c.l.b16 %v491
        %v659 = vunpack.c.l.b16 %v492
        %v660 = vunpack.c.l.b16 %v493
        %v661 = vunpack.c.l.b16 %v494
        %v662 = vunpack.c.l.b16 %v495
        %v663 = vunpack.c.l.b16 %v496
        %v664 = vunpack.c.l.b16 %v497
        %v665 = vunpack.c.l.b16 %v498
        %v666 = vunpack.c.l.b16 %v499
        %v667 = vunpack.c.l.b16 %v500
        %v668 = vunpack.c.l.b16 %v501
        %v669 = vunpack.c.l.b16 %v502
        %v670 = vunpack.c.l.b16 %v503
        %v671 = vunpack.c.l.b16 %v504
        %v672 = vunpack.c.l.b16 %v505
        %v673 = vunpack.c.l.b16 %v506
        %v674 = vunpack.c.l.b16 %v507
        %v675 = vunpack.c.l.b16 %v508
        %v676 = vunpack.c.l.b16 %v509
        %v677 = vunpack.c.l.b16 %v510
        %v678 = vunpack.c.l.b16 %v511
        %v679 = vunpack.c.l.b16 %v512
        %v680 = vunpack.c.l.b16 %v513
        %v681 = vunpack.c.l.b16 %v514
        %v682 = vunpack.c.l.b16 %v515
        %v683 = vunpack.c.l.b16 %v516
        %v684 = vunpack.c.l.b16 %v517
        %v685 = vunpack.c.l.b16 %v518
        %v686 = vunpack.c.l.b16 %v519
        %v687 = vunpack.c.l.b16 %v520
        %v688 = vunpack.c.l.b16 %v521
        %v689 = vunpack.c.l.b16 %v522
        %v690 = vunpack.c.l.b16 %v523
        %v691 = vunpack.c.l.b16 %v524
        %v692 = vunpack.c.l.b16 %v525
        %v693 = vunpack.c.l.b16 %v526
        %v694 = vunpack.c.l.b16 %v527
        %v695 = vunpack.c.l.b16 %v528
        %v696 = vunpack.c.l.b16 %v529
        %v697 = vunpack.c.l.b16 %v530
        %v698 = vunpack.c.l.b16 %v531
        %v699 = vunpack.c.l.b16 %v532
        %v700 = vunpack.c.l.b16 %v533
        %v701 = vunpack.c.l.b16 %v534
        %v702 = vunpack.c.l.b16 %v535
        %v703 = vunpack.c.l.b16 %v536
        %v704 = vunpack.c.l.b16 %v537
        %v705 = vunpack.c.l.b16 %v538
        %v706 = vunpack.c.l.b16 %v539
        %v707 = vunpack.c.l.b16 %v540
        %v708 = vunpack.c.l.b16 %v541
        %v709 = vunpack.c.l.b16 %v542
        %v710 = vunpack.c.l.b16 %v543
        %v711 = vunpack.c.l.b16 %v544
        %v712 = vunpack.c.l.b16 %v545
        %v713 = vunpack.c.l.b16 %v546
        %v714 = vunpack.c.l.b16 %v547
        %v715 = vpack.c.b16 %v636, %v635
        %v716 = vpack.c.b16 %v638, %v637
        %v717 = vpack.c.b16 %v640, %v639
        %v718 = vpack.c.b16 %v642, %v641
        %v719 = vpack.c.b16 %v644, %v643
        %v720 = vpack.c.b16 %v646, %v645
        %v721 = vpack.c.b16 %v648, %v647
        %v722 = vpack.c.b16 %v650, %v649
        %v723 = vpack.c.b16 %v652, %v651
        %v724 = vpack.c.b16 %v654, %v653
        %v725 = vpack.c.b16 %v656, %v655
        %v726 = vpack.c.b16 %v658, %v657
        %v727 = vpack.c.b16 %v660, %v659
        %v728 = vpack.c.b16 %v662, %v661
        %v729 = vpack.c.b16 %v664, %v663
        %v730 = vpack.c.b16 %v666, %v665
        %v731 = vpack.c.b16 %v668, %v667
        %v732 = vpack.c.b16 %v670, %v669
        %v733 = vpack.c.b16 %v672, %v671
        %v734 = vpack.c.b16 %v674, %v673
        %v735 = vpack.c.b16 %v676, %v675
        %v736 = vpack.c.b16 %v678, %v677
        %v737 = vpack.c.b16 %v680, %v679
        %v738 = vpack.c.b16 %v682, %v681
        %v739 = vpack.c.b16 %v684, %v683
        %v740 = vpack.c.b16 %v686, %v685
        %v741 = vpack.c.b16 %v688, %v687
        %v742 = vpack.c.b16 %v690, %v689
        %v743 = vpack.c.b16 %v692, %v691
        %v744 = vpack.c.b16 %v694, %v693
        %v745 = vpack.c.b16 %v696, %v695
        %v746 = vpack.c.b16 %v698, %v697
        %v747 = vpack.c.b16 %v700, %v699
        %v748 = vpack.c.b16 %v702, %v701
        %v749 = vpack.c.b16 %v704, %v703
        %v750 = vpack.c.b16 %v706, %v705
        %v751 = vpack.c.b16 %v708, %v707
        %v752 = vpack.c.b16 %v710, %v709
        %v753 = vpack.c.b16 %v712, %v711
        %v754 = vpack.c.b16 %v714, %v713
        %795 = vmatprep.subr.bf16.mxu0 0
        %796 = vmatpush1.bf16.msra.mxu0 %v715
        %797 = vmatprep.subr.bf16.mxu0 0
        %798 = vmatpush1.bf16.msra.mxu0 %v716
        %799 = vmatprep.subr.bf16.mxu0 0
        %800 = vmatpush1.bf16.msra.mxu0 %v717
        %801 = vmatprep.subr.bf16.mxu0 0
        %802 = vmatpush1.bf16.msra.mxu0 %v718
        %803 = vmatprep.subr.bf16.mxu0 0
        %804 = vmatpush1.bf16.msra.mxu0 %v719
        %805 = vmatprep.subr.bf16.mxu0 0
        %806 = vmatpush1.bf16.msra.mxu0 %v720
        %807 = vmatprep.subr.bf16.mxu0 0
        %808 = vmatpush1.bf16.msra.mxu0 %v721
        %809 = vmatprep.subr.bf16.mxu0 0
        %810 = vmatpush1.bf16.msra.mxu0 %v722
        %811 = vmatprep.subr.bf16.mxu0 0
        %812 = vmatpush1.bf16.msra.mxu0 %v723
        %813 = vmatprep.subr.bf16.mxu0 0
        %814 = vmatpush1.bf16.msra.mxu0 %v724
        %815 = vmatprep.subr.bf16.mxu0 0
        %816 = vmatpush1.bf16.msra.mxu0 %v725
        %817 = vmatprep.subr.bf16.mxu0 0
        %818 = vmatpush1.bf16.msra.mxu0 %v726
        %819 = vmatprep.subr.bf16.mxu0 0
        %820 = vmatpush1.bf16.msra.mxu0 %v727
        %821 = vmatprep.subr.bf16.mxu0 0
        %822 = vmatpush1.bf16.msra.mxu0 %v728
        %823 = vmatprep.subr.bf16.mxu0 0
        %824 = vmatpush1.bf16.msra.mxu0 %v729
        %825 = vmatprep.subr.bf16.mxu0 0
        %826 = vmatpush1.bf16.msra.mxu0 %v730
        %827 = vmatprep.mubr.bf16.mxu0 %v385
        %828 = vmatmul.mubr.bf16.gmra.mrb[0].mxu0 %v362
        %v829 = vpop.f32.mrb[0].mxu0
        %v830 = vadd.f32 %v553, %v829
        %v831 = vpop.f32.mrb[0].mxu0
        %v832 = vpop.f32.mrb[0].mxu0
        %v833 = vadd.f32 %v553, %v832
        %v834 = vpop.f32.mrb[0].mxu0
        %835 = vmatprep.mubr.bf16.mxu0 %v393
        %836 = vmatmul.mubr.bf16.gmra.mrb[0].mxu0 %v363
        %v837 = vpop.f32.mrb[0].mxu0
        %v838 = vadd.f32 %v553, %v837
        %v839 = vpop.f32.mrb[0].mxu0
        %v840 = vpop.f32.mrb[0].mxu0
        %v841 = vadd.f32 %v553, %v840
        %v842 = vpop.f32.mrb[0].mxu0
        %843 = vmatprep.mubr.bf16.mxu0 %v401
        %844 = vmatmul.mubr.bf16.gmra.mrb[0].mxu0 %v364
        %v845 = vpop.f32.mrb[0].mxu0
        %v846 = vadd.f32 %v553, %v845
        %v847 = vpop.f32.mrb[0].mxu0
        %v848 = vpop.f32.mrb[0].mxu0
        %v849 = vadd.f32 %v553, %v848
        %v850 = vpop.f32.mrb[0].mxu0
        %851 = vmatprep.mubr.bf16.mxu0 %v409
        %852 = vmatmul.mubr.bf16.gmra.mrb[0].mxu0 %v365
        %v853 = vpop.f32.mrb[0].mxu0
        %v854 = vadd.f32 %v553, %v853
        %v855 = vpop.f32.mrb[0].mxu0
        %v856 = vpop.f32.mrb[0].mxu0
        %v857 = vadd.f32 %v553, %v856
        %v858 = vpop.f32.mrb[0].mxu0
        %859 = vdwg.mxu0
        %860 = vmatprep.subr.bf16.mxu0 0
        %861 = vmatpush1.bf16.msra.mxu0 %v731
        %862 = vmatprep.subr.bf16.mxu0 0
        %863 = vmatpush1.bf16.msra.mxu0 %v732
        %864 = vmatprep.subr.bf16.mxu0 0
        %865 = vmatpush1.bf16.msra.mxu0 %v733
        %866 = vmatprep.subr.bf16.mxu0 0
        %867 = vmatpush1.bf16.msra.mxu0 %v734
        %868 = vmatprep.subr.bf16.mxu0 0
        %869 = vmatpush1.bf16.msra.mxu0 %v735
        %870 = vmatprep.subr.bf16.mxu0 0
        %871 = vmatpush1.bf16.msra.mxu0 %v736
        %872 = vmatprep.subr.bf16.mxu0 0
        %873 = vmatpush1.bf16.msra.mxu0 %v737
        %874 = vmatprep.subr.bf16.mxu0 0
        %875 = vmatpush1.bf16.msra.mxu0 %v738
        %876 = vmatprep.subr.bf16.mxu0 0
        %877 = vmatpush1.bf16.msra.mxu0 %v739
        %878 = vmatprep.subr.bf16.mxu0 0
        %879 = vmatpush1.bf16.msra.mxu0 %v740
        %880 = vmatprep.subr.bf16.mxu0 0
        %881 = vmatpush1.bf16.msra.mxu0 %v741
        %882 = vmatprep.subr.bf16.mxu0 0
        %883 = vmatpush1.bf16.msra.mxu0 %v742
        %884 = vmatprep.subr.bf16.mxu0 0
        %885 = vmatpush1.bf16.msra.mxu0 %v743
        %886 = vmatprep.subr.bf16.mxu0 0
        %887 = vmatpush1.bf16.msra.mxu0 %v744
        %888 = vmatprep.subr.bf16.mxu0 0
        %889 = vmatpush1.bf16.msra.mxu0 %v745
        %890 = vmatprep.subr.bf16.mxu0 0
        %891 = vmatpush1.bf16.msra.mxu0 %v746
        %892 = vmatprep.mubr.bf16.mxu0 %v435
        %893 = vmatmul.mubr.bf16.gmra.mrb[0].mxu0 %v417
        %v894 = vpop.f32.mrb[0].mxu0
        %v895 = vadd.f32 %v830, %v894
        %v896 = vpop.f32.mrb[0].mxu0
        %v897 = vpop.f32.mrb[0].mxu0
        %v898 = vadd.f32 %v833, %v897
        %v899 = vpop.f32.mrb[0].mxu0
        %900 = vmatprep.mubr.bf16.mxu0 %v439
        %901 = vmatmul.mubr.bf16.gmra.mrb[0].mxu0 %v419
        %v902 = vpop.f32.mrb[0].mxu0
        %v903 = vadd.f32 %v838, %v902
        %v904 = vpop.f32.mrb[0].mxu0
        %v905 = vpop.f32.mrb[0].mxu0
        %v906 = vadd.f32 %v841, %v905
        %v907 = vpop.f32.mrb[0].mxu0
        %908 = vmatprep.mubr.bf16.mxu0 %v443
        %909 = vmatmul.mubr.bf16.gmra.mrb[0].mxu0 %v421
        %v910 = vpop.f32.mrb[0].mxu0
        %v911 = vadd.f32 %v846, %v910
        %v912 = vpop.f32.mrb[0].mxu0
        %v913 = vpop.f32.mrb[0].mxu0
        %v914 = vadd.f32 %v849, %v913
        %v915 = vpop.f32.mrb[0].mxu0
        %916 = vmatprep.mubr.bf16.mxu0 %v449
        %917 = vmatmul.mubr.bf16.gmra.mrb[0].mxu0 %v423
        %v918 = vpop.f32.mrb[0].mxu0
        %v919 = vadd.f32 %v854, %v918
        %v920 = vpop.f32.mrb[0].mxu0
        %v921 = vpop.f32.mrb[0].mxu0
        %v922 = vadd.f32 %v857, %v921
        %v923 = vpop.f32.mrb[0].mxu0
        %924 = vdwg.mxu0
        %925 = vmatprep.subr.bf16.mxu0 0
        %926 = vmatpush1.bf16.msra.mxu0 %v747
        %927 = vmatprep.subr.bf16.mxu0 0
        %928 = vmatpush1.bf16.msra.mxu0 %v748
        %929 = vmatprep.subr.bf16.mxu0 0
        %930 = vmatpush1.bf16.msra.mxu0 %v749
        %931 = vmatprep.subr.bf16.mxu0 0
        %932 = vmatpush1.bf16.msra.mxu0 %v750
        %933 = vmatprep.subr.bf16.mxu0 0
        %934 = vmatpush1.bf16.msra.mxu0 %v751
        %935 = vmatprep.subr.bf16.mxu0 0
        %936 = vmatpush1.bf16.msra.mxu0 %v752
        %937 = vmatprep.subr.bf16.mxu0 0
        %938 = vmatpush1.bf16.msra.mxu0 %v753
        %939 = vmatprep.subr.bf16.mxu0 0
        %940 = vmatpush1.bf16.msra.mxu0 %v754
        %941 = vmatprep.subr.bf16.mxu0 0
        %942 = vmatpush1.bf16.msra.mxu0 0
        %943 = vmatprep.subr.bf16.mxu0 0
        %944 = vmatpush1.bf16.msra.mxu0 0
        %945 = vmatprep.subr.bf16.mxu0 0
        %946 = vmatpush1.bf16.msra.mxu0 0
        %947 = vmatprep.subr.bf16.mxu0 0
        %948 = vmatpush1.bf16.msra.mxu0 0
        %949 = vmatprep.subr.bf16.mxu0 0
        %950 = vmatpush1.bf16.msra.mxu0 0
        %951 = vmatprep.subr.bf16.mxu0 0
        %952 = vmatpush1.bf16.msra.mxu0 0
        %953 = vmatprep.subr.bf16.mxu0 0
        %954 = vmatpush1.bf16.msra.mxu0 0
        %955 = vmatprep.subr.bf16.mxu0 0
        %956 = vmatpush1.bf16.msra.mxu0 0
        %957 = vmatprep.mubr.bf16.mxu0 0
        %958 = vmatmul.mubr.bf16.gmra.mrb[0].mxu0 %v457
        %v959 = vpop.f32.mrb[0].mxu0
        %v960 = vadd.f32 %v895, %v959
        %v961 = vpop.f32.mrb[0].mxu0
        %v962 = vpop.f32.mrb[0].mxu0
        %v963 = vadd.f32 %v898, %v962
        %v964 = vpop.f32.mrb[0].mxu0
        %965 = vmatprep.mubr.bf16.mxu0 0
        %966 = vmatmul.mubr.bf16.gmra.mrb[0].mxu0 %v459
        %v967 = vpop.f32.mrb[0].mxu0
        %v968 = vadd.f32 %v903, %v967
        %v969 = vpop.f32.mrb[0].mxu0
        %v970 = vpop.f32.mrb[0].mxu0
        %v971 = vadd.f32 %v906, %v970
        %v972 = vpop.f32.mrb[0].mxu0
        %973 = vmatprep.mubr.bf16.mxu0 0
        %974 = vmatmul.mubr.bf16.gmra.mrb[0].mxu0 %v461
        %v975 = vpop.f32.mrb[0].mxu0
        %v976 = vadd.f32 %v911, %v975
        %v977 = vpop.f32.mrb[0].mxu0
        %v978 = vpop.f32.mrb[0].mxu0
        %v979 = vadd.f32 %v914, %v978
        %v980 = vpop.f32.mrb[0].mxu0
        %981 = vmatprep.mubr.bf16.mxu0 0
        %982 = vmatmul.mubr.bf16.gmra.mrb[0].mxu0 %v463
        %v983 = vpop.f32.mrb[0].mxu0
        %v984 = vadd.f32 %v919, %v983
        %v985 = vpop.f32.mrb[0].mxu0
        %v986 = vpop.f32.mrb[0].mxu0
        %v987 = vadd.f32 %v922, %v986
        %v988 = vpop.f32.mrb[0].mxu0
        %989 = vdwg.mxu0
        %v990 = vmax.f32 %v960, 0.0
        %v991 = vmax.f32 %v963, 0.0
        %v992 = vmax.f32 %v968, 0.0
        %v993 = vmax.f32 %v971, 0.0
        %v994 = vmax.f32 %v976, 0.0
        %v995 = vmax.f32 %v979, 0.0
        %v996 = vmax.f32 %v984, 0.0
        %v997 = vmax.f32 %v987, 0.0
        %v998 = vld [vmem:[%s326] sm:$0x1]
        %v1000 = vlaneseq
        %v1001 = vshrl.u32 %v1000, 7
        %v1002 = vsub.s32 0, %v1001
        %v1003 = vrot.slane %v998, %v1002
        %v1005 = vmul.f32 %v990, %v1003
        %v1006 = vmul.f32 %v991, %v1003
        %v1007 = vmul.f32 %v992, %v1003
        %v1008 = vmul.f32 %v993, %v1003
        %v1009 = vmul.f32 %v994, %v1003
        %v1010 = vmul.f32 %v995, %v1003
        %v1011 = vmul.f32 %v996, %v1003
        %v1012 = vmul.f32 %v997, %v1003
        %v1013 = vld [vmem:[%s329] sm:$0x1]
        %v1015 = vlaneseq
        %v1016 = vshrl.u32 %v1015, 7
        %v1017 = vsub.s32 0, %v1016
        %v1018 = vrot.slane %v1013, %v1017
        %v1020 = vadd.f32 %v1005, %v1018
        %v1021 = vadd.f32 %v1006, %v1018
        %v1022 = vadd.f32 %v1007, %v1018
        %v1023 = vadd.f32 %v1008, %v1018
        %v1024 = vadd.f32 %v1009, %v1018
        %v1025 = vadd.f32 %v1010, %v1018
        %v1026 = vadd.f32 %v1011, %v1018
        %v1027 = vadd.f32 %v1012, %v1018
        %1028 = vst [vmem:[%s320] sm:$0xff] %v1020
        %1029 = vst [vmem:[%s320 + $0x8] sm:$0xff] %v1021
        %1030 = vst [vmem:[%s320 + $0x10] sm:$0xff] %v1022
        %1031 = vst [vmem:[%s320 + $0x18] sm:$0xff] %v1023
        %1032 = vst [vmem:[%s320 + $0x20] sm:$0xff] %v1024
        %1033 = vst [vmem:[%s320 + $0x28] sm:$0xff] %v1025
        %1034 = vst [vmem:[%s320 + $0x30] sm:$0xff] %v1026
        %1035 = vst [vmem:[%s320 + $0x38] sm:$0xff] %v1027
        %s1036 = sand.u32 %s184, 1
        %s1037 = scalar_lea.sflag [#allocation4], %s1036
        %s1038 = sand.u32 %s184, 1
        %s1039 = smul.addr %s1038, 64
        %s1040 = scalar_lea.vmem [#allocation7], %s1039
        // Predicated region
        $region49: #{tpu_custom_call.1} parent=39 // pred_check
          %p1041 = pneg %p194
        $region50: #{tpu_custom_call.1} parent=39 // pred_check_branch
          %1043 = sbr.rel (%p1041) target = $region52
        $region51: #{tpu_custom_call.1} parent=39 // pred_region
          %s1044 = smul.u32 8, %s30
          %s1046 = ssub.s32 1024, 1024
          %1047 = vsyncadd %s1037, %s1046
          %s1048 = sadd.s32 %s29, %s1044
          %s1049 = smul.addr %s28, 8
          %s1050 = sadd.s32 %s1048, %s1049
          %s1051 = smul.addr %s1050, 128
          %s1052 = scalar_lea.hbm %s5, %s1051
          %s1053 = sshll.u32 %s1040, 4
          %s1054 = int_to_ptr.vmem [resolvable:$true] %s1053
          %1059 = dma.vmem_to_hbm [thread:$0]  %s1054, 1024, %s1052, %s1037, 128, 128, 8
        $region52: #{tpu_custom_call.1} parent=39 // pred_fallthru
          _
      $region40: #{tpu_custom_call.1} parent=5 // pred_fallthru
        _
      %p1060 = scmp.le.s32.totalorder 2, %s18
      // Predicated region
      $region53: #{tpu_custom_call.1} parent=5 // pred_check
        %p1061 = pneg %p1060
      $region54: #{tpu_custom_call.1} parent=5 // pred_check_branch
        %1063 = sbr.rel (%p1061) target = $region56
      $region55: #{tpu_custom_call.1} parent=5 // pred_region
        %s1064 = ssub.s32 %s18, 2
        // Predicated region
        $region57: #{tpu_custom_call.1} parent=55 // pred_check
          %p1065 = pneg %p200
        $region58: #{tpu_custom_call.1} parent=55 // pred_check_branch
          %1067 = sbr.rel (%p1065) target = $region60
        $region59: #{tpu_custom_call.1} parent=55 // pred_region
          %s1068 = sand.u32 %s185, 1
          %s1069 = scalar_lea.sflag [#allocation4], %s1068
          %s1070 = sand.u32 %s185, 1
          %s1071 = smul.addr %s1070, 64
          %s1072 = scalar_lea.vmem [#allocation7], %s1071
          %1073 = dma.done %s1069, 1024
        $region60: #{tpu_custom_call.1} parent=55 // pred_fallthru
          _
      $region56: #{tpu_custom_call.1} parent=5 // pred_fallthru
        _
    $region6: #{tpu_custom_call.1} parent=1 // loop_footer
      %s22 = sadd.s32 1, %s18
    $region7: #{tpu_custom_call.1} parent=1 // loop_footer_branch
      %17 = sbr.rel target = $region3
    $region8: #{tpu_custom_call.1} parent=1 // loop_exit
      _
    %1074 = vsyncpa [#allocation3], 1
    %s1075 = scalar_lea.sflag [#allocation3], 1
    %1076 = vsyncpa %s1075, 1
    %1077 = vsyncpa [#allocation6], 1
    %1078 = vsyncpa [#allocation4], 1
    %s1079 = scalar_lea.sflag [#allocation4], 1
    %1080 = vsyncpa %s1079, 1

</llo_original>
